<compile_context>
chip_gen: v7x
topology: tpu7x:2x2x1
jax: 0.10.0
libtpu: 0.0.40
codegen_flags: <defaults>
</compile_context>

<pallas_src>
import jax
import jax.numpy as jnp
from jax.experimental import pallas as pl
from jax.experimental.pallas import tpu as pltpu


# ------------------------------ helpers -------------------------------------

def _round_up(v, m):
    return -(-v // m) * m


def _tile_candidates(total, unit, cap):
    """Descending tile sizes (multiples of `unit`, <= cap) that divide `total`."""
    cap = max(unit, min(cap, total))
    return sorted((t for t in range(unit, cap + 1, unit) if total % t == 0),
                  reverse=True)


def _vmem_capacity_bytes():
    try:
        info = pltpu.get_tpu_info()
        cap = getattr(info, "vmem_capacity_bytes", None)
        if cap:
            return int(cap)
    except Exception:
        pass
    return 64 * 1024 * 1024   # conservative (v7x-sized) fallback


def _vmem_need(tm, tn, tk, esz, osz, with_acc):
    # double-buffered x / A / out tiles + double-buffered f32 bias row
    # + a (tm, tn) f32 margin for the MXU result temporary.
    need = 2 * (tm * tk + tk * tn) * esz + 2 * tm * tn * osz + 2 * tn * 4
    need += tm * tn * 4
    if with_acc:
        need += tm * tn * 4          # f32 accumulator scratch
    return need


def _greedy_fit(tms, tns, tk, esz, osz, with_acc, budget):
    ti = tj = 0
    while _vmem_need(tms[ti], tns[tj], tk, esz, osz, with_acc) > budget:
        can_tm = ti + 1 < len(tms)
        can_tn = tj + 1 < len(tns)
        if not (can_tm or can_tn):
            break
        tm, tn = tms[ti], tns[tj]
        n_contrib = tk * tn * esz + tm * tn * osz
        m_contrib = tm * tk * esz + tm * tn * osz
        if can_tn and (n_contrib >= m_contrib or not can_tm):
            tj += 1
        else:
            ti += 1
    return tms[ti], tns[tj]


def _pick_tiles(m_pad, n_pad, K, esz, osz, budget, tm_cap, tn_cap):
    """Returns (tm, tn, tk, k_pad, grid_k)."""
    # Full-K candidate: no reduction axis, no accumulator scratch.
    tms = _tile_candidates(m_pad, 8, tm_cap)
    tns = _tile_candidates(n_pad, 128, tn_cap)
    tm, tn = _greedy_fit(tms, tns, K, esz, osz, False, budget)
    fits = _vmem_need(tm, tn, K, esz, osz, False) <= budget
    healthy = fits and tm >= min(256, m_pad) and tn >= min(512, n_pad)
    if healthy:
        return tm, tn, K, K, 1

    # K-split candidate: bounded VMEM independent of K.
    tk = 512
    for cand in (2048, 1024):
        if K % cand == 0:
            tk = cand
            break
    k_pad = _round_up(K, tk)
    grid_k = k_pad // tk
    tms = _tile_candidates(m_pad, 8, min(tm_cap, 512))
    tns = _tile_candidates(n_pad, 128, min(tn_cap, 1024))
    tm, tn = _greedy_fit(tms, tns, tk, esz, osz, True, budget)
    return tm, tn, tk, k_pad, grid_k


# ------------------------------- kernels ------------------------------------

def _fused_kernel(scale_ref, x_ref, a_ref, b_ref, o_ref):
    # Single-shot (full-K) tile: MXU matmul with f32 accumulation + fused
    # scale / broadcast-bias epilogue, single cast + store.
    acc = jnp.dot(x_ref[...], a_ref[...], preferred_element_type=jnp.float32)
    o_ref[...] = (acc * scale_ref[...] + b_ref[...]).astype(o_ref.dtype)


def _ksplit_kernel(scale_ref, x_ref, a_ref, b_ref, o_ref, acc_ref):
    # K-tiled reduction with a resident f32 VMEM accumulator.
    k = pl.program_id(2)

    @pl.when(k == 0)
    def _():
        acc_ref[...] = jnp.zeros_like(acc_ref)

    acc_ref[...] += jnp.dot(x_ref[...], a_ref[...],
                            preferred_element_type=jnp.float32)

    @pl.when(k == pl.num_programs(2) - 1)
    def _():
        o_ref[...] = (acc_ref[...] * scale_ref[...] + b_ref[...]).astype(o_ref.dtype)


# ------------------------------- wrapper ------------------------------------

def abc_layer_forward(x, A, bias, *, a, input_width, bias_tune=1.0,
                      vmem_budget_bytes=None):
    """x: (M, K), A: (K, N), bias: (N,)  ->  (M, N) in the compute dtype."""
    M, K = x.shape
    K2, N = A.shape
    assert K == K2 == input_width

    # Dtype policy: keep bf16 native (full-rate MXU, half the bytes); anything
    # else is computed in f32.  Accumulation is always f32.
    in_dtype = jnp.promote_types(x.dtype, A.dtype)
    compute_dtype = jnp.bfloat16 if in_dtype == jnp.bfloat16 else jnp.float32
    out_dtype = compute_dtype
    esz = 2 if compute_dtype == jnp.bfloat16 else 4
    osz = esz

    scale = jnp.full((1, 1), float(input_width) ** (-float(a)), dtype=jnp.float32)
    bias_eff = (bias.astype(jnp.float32) * jnp.float32(bias_tune)).reshape(1, N)

    # Generation-aware VMEM sizing.
    vmem_cap = _vmem_capacity_bytes()
    if vmem_budget_bytes is None:
        vmem_budget_bytes = max(24 << 20, int(vmem_cap * 0.62))
    big_vmem = vmem_cap >= (96 << 20)          # v5e / v6e (128 MiB) vs v7x (64 MiB)
    tm_cap = 1024 if big_vmem else 512
    tn_cap = 2048 if big_vmem else 1024

    m_pad = _round_up(M, 8)
    n_pad = _round_up(N, 128)
    tm, tn, tk, k_pad, grid_k = _pick_tiles(m_pad, n_pad, K, esz, osz,
                                            vmem_budget_bytes, tm_cap, tn_cap)
    grid_m = m_pad // tm
    grid_n = n_pad // tn

    # Guarantee >=2 steps along a "parallel" axis so v7x's two TensorCores can
    # both be used (harmless single extra step on 1-TC chips).
    if grid_m * grid_n == 1:
        if n_pad % 256 == 0:
            tn //= 2
            grid_n = 2
        elif m_pad % 16 == 0:
            tm //= 2
            grid_m = 2

    needed = _vmem_need(tm, tn, tk, esz, osz, with_acc=(grid_k > 1))
    vmem_limit = int(min(vmem_cap - (16 << 20),
                         max(32 << 20, needed + (8 << 20))))

    # Pad only when needed (K-padding with zeros is exact for the reduction).
    x_p = x.astype(compute_dtype)
    A_p = A.astype(compute_dtype)
    b_p = bias_eff
    if m_pad != M or k_pad != K:
        x_p = jnp.pad(x_p, ((0, m_pad - M), (0, k_pad - K)))
    if k_pad != K or n_pad != N:
        A_p = jnp.pad(A_p, ((0, k_pad - K), (0, n_pad - N)))
    if n_pad != N:
        b_p = jnp.pad(b_p, ((0, 0), (0, n_pad - N)))

    # Grid ordering: keep the operand whose re-streaming would cost more HBM
    # bytes resident over the inner spatial axis; the reduction (k) is last.
    x_bytes = m_pad * k_pad * esz
    a_bytes = k_pad * n_pad * esz
    cost_ijk = (x_bytes * (grid_n if grid_k > 1 else 1)
                + a_bytes * (grid_m if (grid_n > 1 or grid_k > 1) else 1))
    cost_jik = (x_bytes * (grid_n if (grid_m > 1 or grid_k > 1) else 1)
                + a_bytes * (grid_m if grid_k > 1 else 1))

    scale_spec = pl.BlockSpec((1, 1), lambda i, j, k: (0, 0))
    if cost_jik <= cost_ijk:
        grid = (grid_n, grid_m, grid_k)
        x_spec = pl.BlockSpec((tm, tk), lambda j, i, k: (i, k))
        a_spec = pl.BlockSpec((tk, tn), lambda j, i, k: (k, j))
        b_spec = pl.BlockSpec((1, tn), lambda j, i, k: (0, j))
        o_spec = pl.BlockSpec((tm, tn), lambda j, i, k: (i, j))
        streamed_bytes = cost_jik
    else:
        grid = (grid_m, grid_n, grid_k)
        x_spec = pl.BlockSpec((tm, tk), lambda i, j, k: (i, k))
        a_spec = pl.BlockSpec((tk, tn), lambda i, j, k: (k, j))
        b_spec = pl.BlockSpec((1, tn), lambda i, j, k: (0, j))
        o_spec = pl.BlockSpec((tm, tn), lambda i, j, k: (i, j))
        streamed_bytes = cost_ijk

    if grid_k > 1:
        kernel = _ksplit_kernel
        scratch = [pltpu.VMEM((tm, tn), jnp.float32)]
    else:
        kernel = _fused_kernel
        scratch = []

    out_p = pl.pallas_call(
        kernel,
        out_shape=jax.ShapeDtypeStruct((m_pad, n_pad), out_dtype),
        grid_spec=pltpu.PrefetchScalarGridSpec(
            num_scalar_prefetch=0,
            grid=grid,
            in_specs=[scale_spec, x_spec, a_spec, b_spec],
            out_specs=o_spec,
            scratch_shapes=scratch,
        ),
        compiler_params=pltpu.CompilerParams(
            dimension_semantics=("parallel", "parallel", "arbitrary"),
            vmem_limit_bytes=vmem_limit,
        ),
        cost_estimate=pl.CostEstimate(
            flops=2 * M * K * N,
            transcendentals=0,
            bytes_accessed=int(streamed_bytes + 4 * n_pad + osz * m_pad * n_pad),
        ),
    )(scale, x_p, A_p, b_p)

    if (m_pad, n_pad) != (M, N):
        out_p = out_p[:M, :N]
    return out_p


# --------------------------------- test -------------------------------------

if __name__ == "__main__":
    key = jax.random.PRNGKey(0)

    def run_case(batch, in_w, out_w, a_exp, b_exp, btune, k, *, dtype=jnp.float32,
                 budget=None, atol=2e-3, rtol=2e-3):
        kx, kA, kb = jax.random.split(k, 3)
        x = jax.random.normal(kx, (batch, in_w), dtype=jnp.float32)
        A = jax.random.normal(kA, (in_w, out_w), dtype=jnp.float32) * (in_w ** (-b_exp))
        bias = jax.random.normal(kb, (out_w,), dtype=jnp.float32)
        x = x.astype(dtype)
        A = A.astype(dtype)

        out = abc_layer_forward(x, A, bias, a=a_exp, input_width=in_w,
                                bias_tune=btune, vmem_budget_bytes=budget)
        out = jax.block_until_ready(out)

        ref = (x.astype(jnp.float32) @ A.astype(jnp.float32)
               * (in_w ** (-a_exp)) + bias * btune)
        assert out.shape == (batch, out_w)
        assert jnp.allclose(out.astype(jnp.float32), ref, atol=atol, rtol=rtol), \
            f"mismatch at ({batch},{in_w},{out_w}) dtype={dtype}"

    keys = jax.random.split(key, 4)
    # 1. Module-sized f32 case (batch=8, in=32, out=128).
    run_case(8, 32, 128, 0.5, 0.5, 1.0, keys[0])
    # 2. Native bf16 path (bf16 in -> bf16 out, f32 accumulation).
    run_case(16, 64, 256, 0.5, 0.5, 0.5, keys[1], dtype=jnp.bfloat16,
             atol=5e-2, rtol=5e-2)
    # 3. Non-aligned shapes: exercises the pad + slice path.
    run_case(10, 48, 130, 0.5, 0.5, 0.7, keys[2])
    # 4. Forced K-split (tiny VMEM budget): exercises the K-grid accumulator
    #    kernel and zero-padding along K.
    run_case(16, 768, 256, 0.75, 0.5, 1.0, keys[3], budget=1 << 20)

    print("KERNEL_OK")
</pallas_src>

<mosaic_0001>
module attributes {stable_mosaic.version = 11 : i64} {
  func.func @_fused_kernel(%arg0: i32, %arg1: i32, %arg2: i32, %arg3: memref<1x1xf32, #tpu.memory_space<vmem>>, %arg4: memref<8x32xf32, #tpu.memory_space<vmem>>, %arg5: memref<32x128xf32, #tpu.memory_space<vmem>>, %arg6: memref<1x128xf32, #tpu.memory_space<vmem>>, %arg7: memref<8x128xf32, #tpu.memory_space<vmem>>) attributes {dimension_semantics = [#tpu.dimension_semantics<parallel>, #tpu.dimension_semantics<parallel>, #tpu.dimension_semantics<arbitrary>], iteration_bounds = array<i64: 1, 1, 1>, scalar_prefetch = 0 : i64, scratch_operands = 0 : i64, tpu.core_type = #tpu.core_type<tc>, window_params = [{pipeline_mode = #tpu.pipeline_mode<synchronous>, transform_indices = @transform_0, window_bounds = array<i64: 1, 1>}, {transform_indices = @transform_1, window_bounds = array<i64: 8, 32>}, {transform_indices = @transform_2, window_bounds = array<i64: 32, 128>}, {transform_indices = @transform_3, window_bounds = array<i64: 1, 128>}, {transform_indices = @transform_4, window_bounds = array<i64: 8, 128>}]} {
    %c0 = arith.constant 0 : index
    %c0_0 = arith.constant 0 : index
    %0 = vector.load %arg4[%c0, %c0_0] : memref<8x32xf32, #tpu.memory_space<vmem>>, vector<8x32xf32>
    %c0_1 = arith.constant 0 : index
    %c0_2 = arith.constant 0 : index
    %1 = vector.load %arg5[%c0_1, %c0_2] : memref<32x128xf32, #tpu.memory_space<vmem>>, vector<32x128xf32>
    %cst = arith.constant dense<0.000000e+00> : vector<8x128xf32>
    %2 = tpu.matmul %0, %1, %cst {dimension_numbers = #tpu.dot_dimension_numbers<[1], [0], [0], [1], [0, 0, 1, 1], [], []>} : vector<8x32xf32>, vector<32x128xf32>, vector<8x128xf32> -> vector<8x128xf32>
    %c0_3 = arith.constant 0 : index
    %c0_4 = arith.constant 0 : index
    %3 = vector.load %arg3[%c0_3, %c0_4] : memref<1x1xf32, #tpu.memory_space<vmem>>, vector<1x1xf32>
    %4 = vector.broadcast %3 : vector<1x1xf32> to vector<8x128xf32>
    %5 = arith.mulf %2, %4 : vector<8x128xf32>
    %c0_5 = arith.constant 0 : index
    %c0_6 = arith.constant 0 : index
    %6 = vector.load %arg6[%c0_5, %c0_6] : memref<1x128xf32, #tpu.memory_space<vmem>>, vector<1x128xf32>
    %7 = vector.broadcast %6 : vector<1x128xf32> to vector<8x128xf32>
    %8 = arith.addf %5, %7 : vector<8x128xf32>
    %c0_7 = arith.constant 0 : index
    %c0_8 = arith.constant 0 : index
    %9 = vector.load %arg7[%c0_7, %c0_8] : memref<8x128xf32, #tpu.memory_space<vmem>>, vector<8x128xf32>
    tpu.vector_store %arg7[%c0_7, %c0_8], %8 {strides = array<i32>} : memref<8x128xf32, #tpu.memory_space<vmem>>, vector<8x128xf32>,
    return
  }
  func.func @transform_0(%arg0: i32, %arg1: i32, %arg2: i32) -> (i32, i32) {
    %c0_i32 = arith.constant 0 : i32
    %c0_i32_0 = arith.constant 0 : i32
    %c0_i32_1 = arith.constant 0 : i32
    return %c0_i32, %c0_i32_0 : i32, i32
  }
  func.func @transform_1(%arg0: i32, %arg1: i32, %arg2: i32) -> (i32, i32) {
    %c0_i32 = arith.constant 0 : i32
    return %arg1, %arg2 : i32, i32
  }
  func.func @transform_2(%arg0: i32, %arg1: i32, %arg2: i32) -> (i32, i32) {
    %c0_i32 = arith.constant 0 : i32
    return %arg2, %arg0 : i32, i32
  }
  func.func @transform_3(%arg0: i32, %arg1: i32, %arg2: i32) -> (i32, i32) {
    %c0_i32 = arith.constant 0 : i32
    %c0_i32_0 = arith.constant 0 : i32
    return %c0_i32, %arg0 : i32, i32
  }
  func.func @transform_4(%arg0: i32, %arg1: i32, %arg2: i32) -> (i32, i32) {
    %c0_i32 = arith.constant 0 : i32
    return %arg1, %arg0 : i32, i32
  }
}

</mosaic_0001>

<llo_original>
// kernel: tpu_custom_call.1
$region0: #{tpu_custom_call.1}
  #allocation0 [shape = 'u32[]', space=smem, size = 0x4, offset = 0x4, fixed_abs, tag = 'smem constant byte address 0x4 - core index']
  #allocation1 [shape = 'u32[144,128]{1,0:T(1,128)}', space=vmem, size = 0x12000, scoped, tag = 'internal scratch']
  #allocation2 [shape = 'f32[1,1]{1,0:T(1,128)S(1)}', space=vmem, size = 0x200, scoped, tag = 'scoped memory for tpu_custom_call.1']
  %s0 = inlined_call_operand.<no memory space> [shape: f32[1,1], index: 0, kind: input, shape index: {}]
  %s1 = inlined_call_operand.hbm [shape: f32[8,32], index: 1, kind: input, shape index: {}]
  %s2 = inlined_call_operand.hbm [shape: f32[32,128], index: 2, kind: input, shape index: {}]
  %s3 = inlined_call_operand.vmem [shape: f32[1,128], index: 3, kind: input, shape index: {}]
  %s4 = inlined_call_operand.hbm [shape: f32[8,128], index: 4, kind: output, shape index: {}]
  %s5 = sld [smem:[#allocation0]]
  $region34: #{tpu_custom_call.1} parent=0
    _
  %s7 = ssub.s32 1, %s5
  %s8 = scalar_select 0, %s7, %s5
  %v9 = vstv %s0
  %10 = vst [vmem:[#allocation2] sm:$0x1] %v9
  $region1: #{tpu_custom_call.1} parent=0
    #allocation3 [shape = 'u8[4096]{0}', space=vmem, size = 0x1000, scoped, tag = 'input window, operand 1, single buffered']
    #allocation4 [shape = 's32[1]{0}', space=sflag, size = 0x4, scoped, tag = 'scoped memory for tpu_custom_call.1']
    #allocation5 [shape = 's32[1]{0}', space=sflag, size = 0x4, scoped, tag = 'scoped memory for tpu_custom_call.1']
    #allocation6 [shape = 'u8[16384]{0}', space=vmem, size = 0x4000, scoped, tag = 'input window, operand 2, single buffered']
    #allocation7 [shape = 's32[1]{0}', space=sflag, size = 0x4, scoped, tag = 'scoped memory for tpu_custom_call.1']
    #allocation8 [shape = 'u8[4096]{0}', space=vmem, size = 0x1000, scoped, tag = 'output window, operand 0, single buffered']
    %11 = vsyncpa [#allocation4], 0
    %12 = vsyncpa [#allocation7], 0
    %13 = vsyncpa [#allocation5], 0
    // Predicated region
    $region2: #{tpu_custom_call.1} parent=1 // pred_check
      _
    $region3: #{tpu_custom_call.1} parent=1 // pred_check_branch
      %15 = sbr.rel (0) target = $region5
    $region4: #{tpu_custom_call.1} parent=1 // pred_region
      _
    $region5: #{tpu_custom_call.1} parent=1 // pred_fallthru
      _
    // Predicated region
    $region6: #{tpu_custom_call.1} parent=1 // pred_check
      _
    $region7: #{tpu_custom_call.1} parent=1 // pred_check_branch
      %17 = sbr.rel (0) target = $region9
    $region8: #{tpu_custom_call.1} parent=1 // pred_region
      %s19 = ssub.s32 128, 128
      %20 = vsyncadd [#allocation4], %s19
      %s22 = sshll.u32 [#allocation3], 4
      %s23 = int_to_ptr.vmem [resolvable:$true] %s22
      %25 = dma.hbm_to_vmem [thread:$0]  %s1, 128, %s23, [#allocation4]
    $region9: #{tpu_custom_call.1} parent=1 // pred_fallthru
      _
    // Predicated region
    $region10: #{tpu_custom_call.1} parent=1 // pred_check
      _
    $region11: #{tpu_custom_call.1} parent=1 // pred_check_branch
      %27 = sbr.rel (0) target = $region13
    $region12: #{tpu_custom_call.1} parent=1 // pred_region
      %s29 = ssub.s32 512, 512
      %30 = vsyncadd [#allocation7], %s29
      %s31 = sshll.u32 [#allocation6], 4
      %s32 = int_to_ptr.vmem [resolvable:$true] %s31
      %37 = dma.hbm_to_vmem [thread:$0]  %s2, 512, %s32, [#allocation7], 128, 128, 8
    $region13: #{tpu_custom_call.1} parent=1 // pred_fallthru
      _
    // Predicated region
    $region14: #{tpu_custom_call.1} parent=1 // pred_check
      _
    $region15: #{tpu_custom_call.1} parent=1 // pred_check_branch
      %39 = sbr.rel (0) target = $region17
    $region16: #{tpu_custom_call.1} parent=1 // pred_region
      _
    $region17: #{tpu_custom_call.1} parent=1 // pred_fallthru
      _
    // Predicated region
    $region18: #{tpu_custom_call.1} parent=1 // pred_check
      _
    $region19: #{tpu_custom_call.1} parent=1 // pred_check_branch
      %41 = sbr.rel (0) target = $region21
    $region20: #{tpu_custom_call.1} parent=1 // pred_region
      %42 = dma.done [#allocation4], 128
    $region21: #{tpu_custom_call.1} parent=1 // pred_fallthru
      _
    // Predicated region
    $region22: #{tpu_custom_call.1} parent=1 // pred_check
      _
    $region23: #{tpu_custom_call.1} parent=1 // pred_check_branch
      %44 = sbr.rel (0) target = $region25
    $region24: #{tpu_custom_call.1} parent=1 // pred_region
      %45 = dma.done [#allocation7], 512
    $region25: #{tpu_custom_call.1} parent=1 // pred_fallthru
      _
    %v46 = vld [vmem:[#allocation3] sm:$0xff]
    %v47 = vld [vmem:[#allocation6] sm:$0xff]
    %v48 = vld [vmem:[#allocation6 + $0x8] sm:$0xff]
    %v49 = vld [vmem:[#allocation6 + $0x10] sm:$0xff]
    %v50 = vld [vmem:[#allocation6 + $0x18] sm:$0xff]
    %vm51 = vcmask 261120
    %v53 = vsel %vm51, %v46, 0
    %55 = vmatprep.subr.mxu0 0.0
    %56 = vmatpush1.msra.mxu0 %v47
    %57 = vmatprep.subr.mxu0 0.0
    %58 = vmatpush1.msra.mxu0 %v48
    %59 = vmatprep.subr.mxu0 0.0
    %60 = vmatpush1.msra.mxu0 %v49
    %61 = vmatprep.subr.mxu0 0.0
    %62 = vmatpush1.msra.mxu0 %v50
    %63 = vmatprep.subr.mxu0 0.0
    %64 = vmatpush1.msra.mxu0 0.0
    %65 = vmatprep.subr.mxu0 0.0
    %66 = vmatpush1.msra.mxu0 0.0
    %67 = vmatprep.subr.mxu0 0.0
    %68 = vmatpush1.msra.mxu0 0.0
    %69 = vmatprep.subr.mxu0 0.0
    %70 = vmatpush1.msra.mxu0 0.0
    %71 = vmatprep.subr.mxu0 0.0
    %72 = vmatpush1.msra.mxu0 0.0
    %73 = vmatprep.subr.mxu0 0.0
    %74 = vmatpush1.msra.mxu0 0.0
    %75 = vmatprep.subr.mxu0 0.0
    %76 = vmatpush1.msra.mxu0 0.0
    %77 = vmatprep.subr.mxu0 0.0
    %78 = vmatpush1.msra.mxu0 0.0
    %79 = vmatprep.subr.mxu0 0.0
    %80 = vmatpush1.msra.mxu0 0.0
    %81 = vmatprep.subr.mxu0 0.0
    %82 = vmatpush1.msra.mxu0 0.0
    %83 = vmatprep.subr.mxu0 0.0
    %84 = vmatpush1.msra.mxu0 0.0
    %85 = vmatprep.subr.mxu0 0.0
    %86 = vmatpush1.msra.mxu0 0.0
    %87 = vmatprep.subr.mxu0 0.0
    %88 = vmatpush1.msra.mxu0 0.0
    %89 = vmatprep.subr.mxu0 0.0
    %90 = vmatpush1.msra.mxu0 0.0
    %91 = vmatprep.subr.mxu0 0.0
    %92 = vmatpush1.msra.mxu0 0.0
    %93 = vmatprep.subr.mxu0 0.0
    %94 = vmatpush1.msra.mxu0 0.0
    %95 = vmatprep.subr.mxu0 0.0
    %96 = vmatpush1.msra.mxu0 0.0
    %97 = vmatprep.subr.mxu0 0.0
    %98 = vmatpush1.msra.mxu0 0.0
    %99 = vmatprep.subr.mxu0 0.0
    %100 = vmatpush1.msra.mxu0 0.0
    %101 = vmatprep.subr.mxu0 0.0
    %102 = vmatpush1.msra.mxu0 0.0
    %103 = vmatprep.subr.mxu0 0.0
    %104 = vmatpush1.msra.mxu0 0.0
    %105 = vmatprep.subr.mxu0 0.0
    %106 = vmatpush1.msra.mxu0 0.0
    %107 = vmatprep.subr.mxu0 0.0
    %108 = vmatpush1.msra.mxu0 0.0
    %109 = vmatprep.subr.mxu0 0.0
    %110 = vmatpush1.msra.mxu0 0.0
    %111 = vmatprep.subr.mxu0 0.0
    %112 = vmatpush1.msra.mxu0 0.0
    %113 = vmatprep.subr.mxu0 0.0
    %114 = vmatpush1.msra.mxu0 0.0
    %115 = vmatprep.subr.mxu0 0.0
    %116 = vmatpush1.msra.mxu0 0.0
    %117 = vmatprep.subr.mxu0 0.0
    %118 = vmatpush1.msra.mxu0 0.0
    %119 = vmatprep.mubr.f32.mxu0 0.0
    %120 = vmatmul.mubr.f32.gmra.mrb[0].mxu0 %v53
    %v121 = vpop.f32.mrb[0].mxu0
    %v122 = vadd.f32 0.0, %v121
    %v123 = vpop.f32.mrb[0].mxu0
    %124 = vdwg.mxu0
    %v125 = vld [vmem:[#allocation2] sm:$0x1]
    %v127 = vlaneseq
    %v128 = vshrl.u32 %v127, 7
    %v129 = vsub.s32 0, %v128
    %v130 = vrot.slane %v125, %v129
    %131 = vset.pattern.permute.xlu0 0
    %132 = vperm.xlu0 %131, %v130
    %v133 = vpop.permute.xlu0 %132
    %v135 = vmul.f32 %v122, %v133
    %v136 = vld [vmem:[%s3] sm:$0x1]
    %v138 = vlaneseq
    %v139 = vshrl.u32 %v138, 7
    %v140 = vsub.s32 0, %v139
    %v141 = vrot.slane %v136, %v140
    %v143 = vadd.f32 %v135, %v141
    %144 = vst [vmem:[#allocation8] sm:$0xff] %v143
    // Predicated region
    $region26: #{tpu_custom_call.1} parent=1 // pred_check
      _
    $region27: #{tpu_custom_call.1} parent=1 // pred_check_branch
      %146 = sbr.rel (0) target = $region29
    $region28: #{tpu_custom_call.1} parent=1 // pred_region
      %s148 = ssub.s32 128, 128
      %149 = vsyncadd [#allocation5], %s148
      %s151 = sshll.u32 [#allocation8], 4
      %s152 = int_to_ptr.vmem [resolvable:$true] %s151
      %154 = dma.vmem_to_hbm [thread:$0]  %s152, 128, %s4, [#allocation5]
    $region29: #{tpu_custom_call.1} parent=1 // pred_fallthru
      _
    // Predicated region
    $region30: #{tpu_custom_call.1} parent=1 // pred_check
      _
    $region31: #{tpu_custom_call.1} parent=1 // pred_check_branch
      %156 = sbr.rel (0) target = $region33
    $region32: #{tpu_custom_call.1} parent=1 // pred_region
      %157 = dma.done [#allocation5], 128
    $region33: #{tpu_custom_call.1} parent=1 // pred_fallthru
      _
    %158 = vsyncpa [#allocation4], 1
    %159 = vsyncpa [#allocation7], 1
    %160 = vsyncpa [#allocation5], 1

</llo_original>
